<compile_context>
chip_gen: v7x
topology: tpu7x:2x2x1
jax: 0.10.0
libtpu: 0.0.40
codegen_flags: <defaults>
</compile_context>

<pallas_src>
import functools

import jax
import jax.numpy as jnp
from jax.experimental import pallas as pl
from jax.experimental.pallas import tpu as pltpu

_STRIP = 128  # sublane strip height for interleaved transpose + compute


def _fused_kernel(x1_ref, x2_ref, o_ref):
    # x1_ref / o_ref: (tm, tn) tile of x1[b] / out[b];  x2_ref: (tn, tm) tile of x2[b].
    # tm is a multiple of _STRIP, so a static Python loop over <=4 strips with
    # static slices (zero-cost ref views) keeps the transposed intermediate at
    # (_STRIP, tn) instead of the whole (tm, tn) tile.
    tm = x1_ref.shape[0]
    for r0 in range(0, tm, _STRIP):
        x1 = x1_ref[r0:r0 + _STRIP, :]                     # (STRIP, tn)
        v1 = x2_ref[:, r0:r0 + _STRIP].T                   # (tn, STRIP) -> (STRIP, tn), XLU
        t3 = jax.nn.sigmoid(x1 * v1 + x1)                  # sigmoid(x1*v1 + x1), EUP
        o_ref[r0:r0 + _STRIP, :] = jnp.maximum(t3 + x1, 0.0)


def _round_up(x, m):
    return ((x + m - 1) // m) * m


def _reference(x1, x2):
    v1 = jnp.swapaxes(x2, -1, -2)          # x2.permute(0, 2, 1)
    t3 = jax.nn.sigmoid(x1 * v1 + x1)
    return jnp.maximum(t3 + x1, 0.0)


@functools.partial(jax.jit, static_argnames=("tile",))
def fused_permute_mul_sigmoid_relu(x1, x2, *, tile=512):
    """Pallas implementation of Model.forward.

    x1: (B, M, N), x2: (B, N, M)  ->  out: (B, M, N)
    """
    B, M, N = x1.shape
    assert x2.shape == (B, N, M), (x1.shape, x2.shape)

    # Tiny-shape fast path (e.g. the original 1x2x2 module input): plain XLA is
    # strictly faster than launching a (128,128)-tiled kernel.
    if M * N < _STRIP * 128:
        return _reference(x1, x2)

    # (8,128)-aligned tile sides, capped at `tile`. No host-side padding: edge
    # tiles are handled by Pallas OOB read-pad / store-drop.
    tile = max(_STRIP, _round_up(tile, _STRIP))
    tm = min(tile, _round_up(M, _STRIP))
    tn = min(tile, _round_up(N, _STRIP))

    # Leading grid axis = M tiles so v7x can shard across its 2 TCs even if B==1.
    grid = (pl.cdiv(M, tm), pl.cdiv(N, tn), B)

    itemsize = jnp.dtype(x1.dtype).itemsize
    # 3 arrays x 2 pipeline buffers per tile + headroom for strip scratch.
    vmem_limit = int(min(64 * 2**20, max(16 * 2**20, 8 * tm * tn * itemsize)))

    cost = pl.CostEstimate(
        flops=5 * B * M * N,
        transcendentals=B * M * N,
        bytes_accessed=3 * B * M * N * itemsize,
    )

    return pl.pallas_call(
        _fused_kernel,
        out_shape=jax.ShapeDtypeStruct((B, M, N), x1.dtype),
        grid_spec=pltpu.PrefetchScalarGridSpec(
            num_scalar_prefetch=0,
            grid=grid,
            in_specs=[
                # Batch dim squeezed (None) -> kernel refs are 2-D tiles.
                pl.BlockSpec((None, tm, tn), lambda i, j, b: (b, i, j)),
                # x2 tile is the transposed (tn, tm) block at (j, i): the
                # permute(0,2,1) becomes a cheap per-tile XLU transpose.
                pl.BlockSpec((None, tn, tm), lambda i, j, b: (b, j, i)),
            ],
            out_specs=pl.BlockSpec((None, tm, tn), lambda i, j, b: (b, i, j)),
        ),
        compiler_params=pltpu.CompilerParams(
            dimension_semantics=("parallel", "parallel", "parallel"),
            vmem_limit_bytes=vmem_limit,
        ),
        cost_estimate=cost,
    )(x1, x2)


if __name__ == "__main__":
    key = jax.random.PRNGKey(0)
    k1, k2, k3, k4, k5, k6 = jax.random.split(key, 6)

    # Case 1: multi-tile grid with small tiles (exercises the transposed
    # index_map across tiles and the batch axis).
    B, M, N = 2, 256, 384
    x1 = jax.random.normal(k1, (B, M, N), dtype=jnp.float32)
    x2 = jax.random.normal(k2, (B, N, M), dtype=jnp.float32)
    out = jax.block_until_ready(fused_permute_mul_sigmoid_relu(x1, x2, tile=128))
    ref = _reference(x1, x2)
    assert out.shape == (B, M, N)
    assert jnp.allclose(out, ref, atol=1e-5, rtol=1e-5)

    # Case 2: non-(8,128)-aligned shape -- exercises padding-free edge handling
    # (OOB reads / dropped stores) on both the M and N axes.
    B2, M2, N2 = 1, 200, 300
    y1 = jax.random.normal(k3, (B2, M2, N2), dtype=jnp.float32)
    y2 = jax.random.normal(k4, (B2, N2, M2), dtype=jnp.float32)
    out2 = jax.block_until_ready(fused_permute_mul_sigmoid_relu(y1, y2))
    ref2 = _reference(y1, y2)
    assert out2.shape == (B2, M2, N2)
    assert jnp.allclose(out2, ref2, atol=1e-5, rtol=1e-5)

    # Case 3: the original module's tiny shape (1, 2, 2) -- small-shape fast path.
    B3, M3, N3 = 1, 2, 2
    z1 = jax.random.normal(k5, (B3, M3, N3), dtype=jnp.float32)
    z2 = jax.random.normal(k6, (B3, N3, M3), dtype=jnp.float32)
    out3 = jax.block_until_ready(fused_permute_mul_sigmoid_relu(z1, z2))
    ref3 = _reference(z1, z2)
    assert out3.shape == (B3, M3, N3)
    assert jnp.allclose(out3, ref3, atol=1e-5, rtol=1e-5)

    print("KERNEL_OK")
</pallas_src>

<mosaic_0001>
module attributes {stable_mosaic.version = 11 : i64} {
  func.func @_fused_kernel(%arg0: i32, %arg1: i32, %arg2: i32, %arg3: memref<1x128x128xf32, #tpu.memory_space<vmem>>, %arg4: memref<1x128x128xf32, #tpu.memory_space<vmem>>, %arg5: memref<1x128x128xf32, #tpu.memory_space<vmem>>) attributes {dimension_semantics = [#tpu.dimension_semantics<parallel>, #tpu.dimension_semantics<parallel>, #tpu.dimension_semantics<parallel>], iteration_bounds = array<i64: 2, 3, 2>, scalar_prefetch = 0 : i64, scratch_operands = 0 : i64, tpu.core_type = #tpu.core_type<tc>, window_params = [{transform_indices = @transform_0, window_bounds = array<i64: 1, 128, 128>}, {transform_indices = @transform_1, window_bounds = array<i64: 1, 128, 128>}, {transform_indices = @transform_2, window_bounds = array<i64: 1, 128, 128>}]} {
    %c0 = arith.constant 0 : index
    %c0_0 = arith.constant 0 : index
    %c0_1 = arith.constant 0 : index
    %0 = vector.load %arg3[%c0, %c0_0, %c0_1] : memref<1x128x128xf32, #tpu.memory_space<vmem>>, vector<1x128x128xf32>
    %1 = vector.shape_cast %0 : vector<1x128x128xf32> to vector<128x128xf32>
    %c0_2 = arith.constant 0 : index
    %c0_3 = arith.constant 0 : index
    %c0_4 = arith.constant 0 : index
    %2 = vector.load %arg4[%c0_2, %c0_3, %c0_4] : memref<1x128x128xf32, #tpu.memory_space<vmem>>, vector<1x128x128xf32>
    %3 = vector.shape_cast %2 : vector<1x128x128xf32> to vector<128x128xf32>
    %4 = tpu.transpose %3, [1, 0] : vector<128x128xf32> -> vector<128x128xf32>
    %5 = arith.mulf %1, %4 : vector<128x128xf32>
    %6 = arith.addf %5, %1 : vector<128x128xf32>
    %7 = arith.negf %6 : vector<128x128xf32>
    %8 = math.exp %7 : vector<128x128xf32>
    %cst = arith.constant 1.000000e+00 : f32
    %9 = vector.broadcast %cst : f32 to vector<128x128xf32>
    %10 = arith.addf %9, %8 : vector<128x128xf32>
    %11 = arith.divf %9, %10 : vector<128x128xf32>
    %12 = arith.addf %11, %1 : vector<128x128xf32>
    %cst_5 = arith.constant 0.000000e+00 : f32
    %13 = vector.broadcast %cst_5 : f32 to vector<128x128xf32>
    %14 = arith.maximumf %12, %13 : vector<128x128xf32>
    %c0_6 = arith.constant 0 : index
    %c0_7 = arith.constant 0 : index
    %c0_8 = arith.constant 0 : index
    %15 = vector.load %arg5[%c0_6, %c0_7, %c0_8] : memref<1x128x128xf32, #tpu.memory_space<vmem>>, vector<1x128x128xf32>
    %16 = vector.shape_cast %15 : vector<1x128x128xf32> to vector<128x128xf32>
    %17 = vector.shape_cast %14 : vector<128x128xf32> to vector<1x128x128xf32>
    tpu.vector_store %arg5[%c0_6, %c0_7, %c0_8], %17 {strides = array<i32>} : memref<1x128x128xf32, #tpu.memory_space<vmem>>, vector<1x128x128xf32>,
    return
  }
  func.func @transform_0(%arg0: i32, %arg1: i32, %arg2: i32) -> (i32, i32, i32) {
    %c0_i32 = arith.constant 0 : i32
    return %arg2, %arg0, %arg1 : i32, i32, i32
  }
  func.func @transform_1(%arg0: i32, %arg1: i32, %arg2: i32) -> (i32, i32, i32) {
    %c0_i32 = arith.constant 0 : i32
    return %arg2, %arg1, %arg0 : i32, i32, i32
  }
  func.func @transform_2(%arg0: i32, %arg1: i32, %arg2: i32) -> (i32, i32, i32) {
    %c0_i32 = arith.constant 0 : i32
    return %arg2, %arg0, %arg1 : i32, i32, i32
  }
}

</mosaic_0001>

<llo_original>
// kernel: fused_permute_mul_sigmoid_relu.1
$region0: #{fused_permute_mul_sigmoid_relu.1}
  #allocation0 [shape = 'u32[]', space=smem, size = 0x4, offset = 0x4, fixed_abs, tag = 'smem constant byte address 0x4 - core index']
  #allocation1 [shape = 'u32[144,128]{1,0:T(1,128)}', space=vmem, size = 0x12000, scoped, tag = 'internal scratch']
  %s0 = inlined_call_operand.hbm [shape: f32[2,256,384], index: 0, kind: input, shape index: {}]
  %s1 = inlined_call_operand.hbm [shape: f32[2,384,256], index: 1, kind: input, shape index: {}]
  %s2 = inlined_call_operand.hbm [shape: f32[2,256,384], index: 2, kind: output, shape index: {}]
  %s3 = sld [smem:[#allocation0]]
  $region49: #{fused_permute_mul_sigmoid_relu.1} parent=0
    _
  %s5 = ssub.s32 1, %s3
  %s6 = scalar_select 0, %s5, %s3
  $region1: #{fused_permute_mul_sigmoid_relu.1} parent=0
    #allocation2 [shape = 'u8[131072]{0}', space=vmem, size = 0x20000, scoped, tag = 'input window, operand 0']
    #allocation3 [shape = 's32[2]{0}', space=sflag, size = 0x8, scoped, tag = 'scoped memory for fused_permute_mul_sigmoid_relu.1']
    #allocation4 [shape = 's32[2]{0}', space=sflag, size = 0x8, scoped, tag = 'scoped memory for fused_permute_mul_sigmoid_relu.1']
    #allocation5 [shape = 'u8[131072]{0}', space=vmem, size = 0x20000, scoped, tag = 'input window, operand 1']
    #allocation6 [shape = 's32[2]{0}', space=sflag, size = 0x8, scoped, tag = 'scoped memory for fused_permute_mul_sigmoid_relu.1']
    #allocation7 [shape = 'u8[131072]{0}', space=vmem, size = 0x20000, scoped, tag = 'output window, operand 0']
    %7 = vsyncpa [#allocation3], 0
    %s8 = scalar_lea.sflag [#allocation3], 1
    %9 = vsyncpa %s8, 0
    %10 = vsyncpa [#allocation6], 0
    %s11 = scalar_lea.sflag [#allocation6], 1
    %12 = vsyncpa %s11, 0
    %13 = vsyncpa [#allocation4], 0
    %s14 = scalar_lea.sflag [#allocation4], 1
    %15 = vsyncpa %s14, 0
    loop: start=0, step=1, limit=14
    $region2: #{fused_permute_mul_sigmoid_relu.1} parent=1 // loop_pre_header
      _
    $region3: #{fused_permute_mul_sigmoid_relu.1} parent=1 // loop_header
      %s17 = sphi 0, %s21
      %p18 = scmp.ge.s32.totalorder %s17, 14
      %s24 = sphi 0, %s43
      %s25 = sphi 0, %s39
      %s26 = sphi 0, %s35
      %s27 = sphi 0, %s24
      %s28 = sphi 0, %s25
      %s29 = sphi 0, %s26
      %s30 = sphi 0, %s27
      %s31 = sphi 0, %s28
      %s32 = sphi 0, %s29
      %s50 = sphi 0, %s52
      %s53 = sphi 0, %s50
      %s54 = sphi 0, %s53
      %s70 = sphi 0, %s54
      %s80 = sphi 0, %s82
      %s83 = sphi 0, %s80
      %s84 = sphi 0, %s83
      %s100 = sphi 0, %s84
      %s110 = sphi 0, %s112
      %s113 = sphi 0, %s110
      %s114 = sphi 0, %s113
      %s130 = sphi 0, %s114
    $region4: #{fused_permute_mul_sigmoid_relu.1} parent=1 // loop_header_branch
      %20 = sbr.rel (%p18) target = $region8
    $region5: #{fused_permute_mul_sigmoid_relu.1} parent=1 // loop_body
      %s22 = ssub.s32 %s17, 1
      %s23 = ssub.s32 %s17, 2
      %s33 = sadd.s32 1, %s26
      %p34 = scmp.ge.s32.totalorder %s33, 2
      %s35 = scalar_select %p34, 0, %s33
      %s36 = sadd.s32 1, %s25
      %s37 = scalar_select %p34, %s36, %s25
      %p38 = scmp.ge.s32.totalorder %s37, 3
      %s39 = scalar_select %p38, 0, %s37
      %s40 = sadd.s32 1, %s24
      %s41 = scalar_select %p38, %s40, %s24
      %p42 = scmp.ge.s32.totalorder %s41, 2
      %s43 = scalar_select %p42, 0, %s41
      %s44 = ssub.s32 %s26, %s35
      %s45 = ssub.s32 %s24, %s43
      %s46 = sor.u32 %s44, %s45
      %s47 = ssub.s32 %s25, %s39
      %s48 = sor.u32 %s46, %s47
      %p49 = scmp.eq.s32.totalorder %s48, 0
      %s51 = sadd.s32 %s50, 1
      %s52 = scalar_select %p49, %s50, %s51
      %p55 = pneg %p49
      %p56 = scmp.eq.s32.totalorder %s17, 11
      %p57 = por %p55, %p56
      %p58 = scmp.ne.s32.totalorder %s50, %s53
      %p59 = scmp.eq.s32.totalorder %s17, 0
      %p60 = por %p58, %p59
      %p61 = scmp.ne.s32.totalorder %s50, %s53
      %p62 = scmp.eq.s32.totalorder %s22, 11
      %p63 = por %p61, %p62
      %p64 = scmp.ne.s32.totalorder %s53, %s54
      %p65 = scmp.eq.s32.totalorder %s22, 0
      %p66 = por %p64, %p65
      %p67 = scmp.ne.s32.totalorder %s53, %s54
      %p68 = scmp.eq.s32.totalorder %s23, 11
      %p69 = por %p67, %p68
      %p71 = scmp.ne.s32.totalorder %s54, %s70
      %p72 = scmp.eq.s32.totalorder %s23, 0
      %p73 = por %p71, %p72
      %s74 = ssub.s32 %s26, %s35
      %s75 = ssub.s32 %s25, %s39
      %s76 = sor.u32 %s74, %s75
      %s77 = ssub.s32 %s24, %s43
      %s78 = sor.u32 %s76, %s77
      %p79 = scmp.eq.s32.totalorder %s78, 0
      %s81 = sadd.s32 %s80, 1
      %s82 = scalar_select %p79, %s80, %s81
      %p85 = pneg %p79
      %p86 = scmp.eq.s32.totalorder %s17, 11
      %p87 = por %p85, %p86
      %p88 = scmp.ne.s32.totalorder %s80, %s83
      %p89 = scmp.eq.s32.totalorder %s17, 0
      %p90 = por %p88, %p89
      %p91 = scmp.ne.s32.totalorder %s80, %s83
      %p92 = scmp.eq.s32.totalorder %s22, 11
      %p93 = por %p91, %p92
      %p94 = scmp.ne.s32.totalorder %s83, %s84
      %p95 = scmp.eq.s32.totalorder %s22, 0
      %p96 = por %p94, %p95
      %p97 = scmp.ne.s32.totalorder %s83, %s84
      %p98 = scmp.eq.s32.totalorder %s23, 11
      %p99 = por %p97, %p98
      %p101 = scmp.ne.s32.totalorder %s84, %s100
      %p102 = scmp.eq.s32.totalorder %s23, 0
      %p103 = por %p101, %p102
      %s104 = ssub.s32 %s26, %s35
      %s105 = ssub.s32 %s24, %s43
      %s106 = sor.u32 %s104, %s105
      %s107 = ssub.s32 %s25, %s39
      %s108 = sor.u32 %s106, %s107
      %p109 = scmp.eq.s32.totalorder %s108, 0
      %s111 = sadd.s32 %s110, 1
      %s112 = scalar_select %p109, %s110, %s111
      %p115 = pneg %p109
      %p116 = scmp.eq.s32.totalorder %s17, 11
      %p117 = por %p115, %p116
      %p118 = scmp.ne.s32.totalorder %s110, %s113
      %p119 = scmp.eq.s32.totalorder %s17, 0
      %p120 = por %p118, %p119
      %p121 = scmp.ne.s32.totalorder %s110, %s113
      %p122 = scmp.eq.s32.totalorder %s22, 11
      %p123 = por %p121, %p122
      %p124 = scmp.ne.s32.totalorder %s113, %s114
      %p125 = scmp.eq.s32.totalorder %s22, 0
      %p126 = por %p124, %p125
      %p127 = scmp.ne.s32.totalorder %s113, %s114
      %p128 = scmp.eq.s32.totalorder %s23, 11
      %p129 = por %p127, %p128
      %p131 = scmp.ne.s32.totalorder %s114, %s130
      %p132 = scmp.eq.s32.totalorder %s23, 0
      %p133 = por %p131, %p132
      %p134 = scmp.le.s32.totalorder 1, %s17
      %p135 = scmp.lt.s32.totalorder %s17, 13
      %p136 = pnand %p134, %p135
      %p137 = pneg %p136
      // Predicated region
      $region9: #{fused_permute_mul_sigmoid_relu.1} parent=5 // pred_check
        _
      $region10: #{fused_permute_mul_sigmoid_relu.1} parent=5 // pred_check_branch
        %139 = sbr.rel (%p136) target = $region12
      $region11: #{fused_permute_mul_sigmoid_relu.1} parent=5 // pred_region
        %s140 = ssub.s32 %s17, 1
      $region12: #{fused_permute_mul_sigmoid_relu.1} parent=5 // pred_fallthru
        _
      %p141 = scmp.lt.s32.totalorder %s17, 12
      // Predicated region
      $region13: #{fused_permute_mul_sigmoid_relu.1} parent=5 // pred_check
        %p142 = pneg %p141
      $region14: #{fused_permute_mul_sigmoid_relu.1} parent=5 // pred_check_branch
        %144 = sbr.rel (%p142) target = $region16
      $region15: #{fused_permute_mul_sigmoid_relu.1} parent=5 // pred_region
        // Predicated region
        $region17: #{fused_permute_mul_sigmoid_relu.1} parent=15 // pred_check
          %p145 = pneg %p60
        $region18: #{fused_permute_mul_sigmoid_relu.1} parent=15 // pred_check_branch
          %147 = sbr.rel (%p145) target = $region20
        $region19: #{fused_permute_mul_sigmoid_relu.1} parent=15 // pred_region
          %s148 = sand.u32 %s50, 1
          %s149 = scalar_lea.sflag [#allocation3], %s148
          %s150 = sand.u32 %s50, 1
          %s151 = smul.addr %s150, 128
          %s152 = scalar_lea.vmem [#allocation2], %s151
          %s153 = smul.u32 16, %s24
          %s155 = ssub.s32 2048, 2048
          %156 = vsyncadd %s149, %s155
          %s157 = smul.addr %s153, 3
          %s158 = sadd.s32 %s25, %s157
          %s159 = smul.addr %s26, 96
          %s160 = sadd.s32 %s158, %s159
          %s161 = smul.addr %s160, 128
          %s162 = scalar_lea.hbm %s0, %s161
          %s163 = sshll.u32 %s152, 4
          %s164 = int_to_ptr.vmem [resolvable:$true] %s163
          %169 = dma.hbm_to_vmem [thread:$0]  %s162, 2048, %s164, %s149, 384, 128, 8
        $region20: #{fused_permute_mul_sigmoid_relu.1} parent=15 // pred_fallthru
          _
        // Predicated region
        $region21: #{fused_permute_mul_sigmoid_relu.1} parent=15 // pred_check
          %p170 = pneg %p90
        $region22: #{fused_permute_mul_sigmoid_relu.1} parent=15 // pred_check_branch
          %172 = sbr.rel (%p170) target = $region24
        $region23: #{fused_permute_mul_sigmoid_relu.1} parent=15 // pred_region
          %s173 = sand.u32 %s80, 1
          %s174 = scalar_lea.sflag [#allocation6], %s173
          %s175 = sand.u32 %s80, 1
          %s176 = smul.addr %s175, 128
          %s177 = scalar_lea.vmem [#allocation5], %s176
          %s178 = smul.u32 16, %s25
          %s180 = ssub.s32 2048, 2048
          %181 = vsyncadd %s174, %s180
          %s182 = smul.addr %s178, 2
          %s183 = sadd.s32 %s24, %s182
          %s184 = smul.addr %s26, 96
          %s185 = sadd.s32 %s183, %s184
          %s186 = smul.addr %s185, 128
          %s187 = scalar_lea.hbm %s1, %s186
          %s188 = sshll.u32 %s177, 4
          %s189 = int_to_ptr.vmem [resolvable:$true] %s188
          %194 = dma.hbm_to_vmem [thread:$0]  %s187, 2048, %s189, %s174, 256, 128, 8
        $region24: #{fused_permute_mul_sigmoid_relu.1} parent=15 // pred_fallthru
          _
      $region16: #{fused_permute_mul_sigmoid_relu.1} parent=5 // pred_fallthru
        _
      %p195 = scmp.le.s32.totalorder 1, %s17
      %p196 = scmp.lt.s32.totalorder %s17, 13
      %p197 = pnand %p195, %p196
      %p198 = pneg %p197
      // Predicated region
      $region25: #{fused_permute_mul_sigmoid_relu.1} parent=5 // pred_check
        _
      $region26: #{fused_permute_mul_sigmoid_relu.1} parent=5 // pred_check_branch
        %200 = sbr.rel (%p197) target = $region28
      $region27: #{fused_permute_mul_sigmoid_relu.1} parent=5 // pred_region
        %s201 = ssub.s32 %s17, 1
        %s202 = sand.u32 %s53, 1
        %s203 = scalar_lea.sflag [#allocation3], %s202
        %s204 = sand.u32 %s53, 1
        %s205 = smul.addr %s204, 128
        %s206 = scalar_lea.vmem [#allocation2], %s205
        // Predicated region
        $region29: #{fused_permute_mul_sigmoid_relu.1} parent=27 // pred_check
          %p207 = pneg %p66
        $region30: #{fused_permute_mul_sigmoid_relu.1} parent=27 // pred_check_branch
          %209 = sbr.rel (%p207) target = $region32
        $region31: #{fused_permute_mul_sigmoid_relu.1} parent=27 // pred_region
          %210 = dma.done %s203, 2048
        $region32: #{fused_permute_mul_sigmoid_relu.1} parent=27 // pred_fallthru
          _
        %s211 = sand.u32 %s83, 1
        %s212 = scalar_lea.sflag [#allocation6], %s211
        %s213 = sand.u32 %s83, 1
        %s214 = smul.addr %s213, 128
        %s215 = scalar_lea.vmem [#allocation5], %s214
        // Predicated region
        $region33: #{fused_permute_mul_sigmoid_relu.1} parent=27 // pred_check
          %p216 = pneg %p96
        $region34: #{fused_permute_mul_sigmoid_relu.1} parent=27 // pred_check_branch
          %218 = sbr.rel (%p216) target = $region36
        $region35: #{fused_permute_mul_sigmoid_relu.1} parent=27 // pred_region
          %219 = dma.done %s212, 2048
        $region36: #{fused_permute_mul_sigmoid_relu.1} parent=27 // pred_fallthru
          _
        %s220 = sand.u32 %s53, 1
        %s221 = scalar_lea.sflag [#allocation3], %s220
        %s222 = sand.u32 %s53, 1
        %s223 = smul.addr %s222, 128
        %s224 = scalar_lea.vmem [#allocation2], %s223
        %p225 = pneg %p66
        %p226 = pneg %p63
        %s227 = sand.u32 %s83, 1
        %s228 = scalar_lea.sflag [#allocation6], %s227
        %s229 = sand.u32 %s83, 1
        %s230 = smul.addr %s229, 128
        %s231 = scalar_lea.vmem [#allocation5], %s230
        %p232 = pneg %p96
        %p233 = pneg %p93
        %p234 = pneg %p126
        %p235 = pneg %p123
        %s236 = sand.u32 %s113, 1
        %s237 = scalar_lea.sflag [#allocation4], %s236
        %s238 = sand.u32 %s113, 1
        %s239 = smul.addr %s238, 128
        %s240 = scalar_lea.vmem [#allocation7], %s239
        %s241 = smul.u32 16, %s27
        %s242 = smul.u32 16, %s28
        %s243 = smul.u32 16, %s27
        %v244 = vld [vmem:[%s206] sm:$0xff]
        %v245 = vld [vmem:[%s206 + $0x8] sm:$0xff]
        %v246 = vld [vmem:[%s206 + $0x10] sm:$0xff]
        %v247 = vld [vmem:[%s206 + $0x18] sm:$0xff]
        %v248 = vld [vmem:[%s206 + $0x20] sm:$0xff]
        %v249 = vld [vmem:[%s206 + $0x28] sm:$0xff]
        %v250 = vld [vmem:[%s206 + $0x30] sm:$0xff]
        %v251 = vld [vmem:[%s206 + $0x38] sm:$0xff]
        %v252 = vld [vmem:[%s206 + $0x40] sm:$0xff]
        %v253 = vld [vmem:[%s206 + $0x48] sm:$0xff]
        %v254 = vld [vmem:[%s206 + $0x50] sm:$0xff]
        %v255 = vld [vmem:[%s206 + $0x58] sm:$0xff]
        %v256 = vld [vmem:[%s206 + $0x60] sm:$0xff]
        %v257 = vld [vmem:[%s206 + $0x68] sm:$0xff]
        %v258 = vld [vmem:[%s206 + $0x70] sm:$0xff]
        %v259 = vld [vmem:[%s206 + $0x78] sm:$0xff]
        %v260 = vld [vmem:[%s215] sm:$0xff]
        %v261 = vld [vmem:[%s215 + $0x8] sm:$0xff]
        %v262 = vld [vmem:[%s215 + $0x10] sm:$0xff]
        %v263 = vld [vmem:[%s215 + $0x18] sm:$0xff]
        %v264 = vld [vmem:[%s215 + $0x20] sm:$0xff]
        %v265 = vld [vmem:[%s215 + $0x28] sm:$0xff]
        %v266 = vld [vmem:[%s215 + $0x30] sm:$0xff]
        %v267 = vld [vmem:[%s215 + $0x38] sm:$0xff]
        %v268 = vld [vmem:[%s215 + $0x40] sm:$0xff]
        %v269 = vld [vmem:[%s215 + $0x48] sm:$0xff]
        %v270 = vld [vmem:[%s215 + $0x50] sm:$0xff]
        %v271 = vld [vmem:[%s215 + $0x58] sm:$0xff]
        %v272 = vld [vmem:[%s215 + $0x60] sm:$0xff]
        %v273 = vld [vmem:[%s215 + $0x68] sm:$0xff]
        %v274 = vld [vmem:[%s215 + $0x70] sm:$0xff]
        %v275 = vld [vmem:[%s215 + $0x78] sm:$0xff]
        %276 = vxpose.xlu0.b32.start [1/16] %v260, 128
        %277 = vxpose.xlu0.b32.cont [2/16] %v261, 128
        %278 = vxpose.xlu0.b32.cont [3/16] %v262, 128
        %279 = vxpose.xlu0.b32.cont [4/16] %v263, 128
        %280 = vxpose.xlu0.b32.cont [5/16] %v264, 128
        %281 = vxpose.xlu0.b32.cont [6/16] %v265, 128
        %282 = vxpose.xlu0.b32.cont [7/16] %v266, 128
        %283 = vxpose.xlu0.b32.cont [8/16] %v267, 128
        %284 = vxpose.xlu0.b32.cont [9/16] %v268, 128
        %285 = vxpose.xlu0.b32.cont [10/16] %v269, 128
        %286 = vxpose.xlu0.b32.cont [11/16] %v270, 128
        %287 = vxpose.xlu0.b32.cont [12/16] %v271, 128
        %288 = vxpose.xlu0.b32.cont [13/16] %v272, 128
        %289 = vxpose.xlu0.b32.cont [14/16] %v273, 128
        %290 = vxpose.xlu0.b32.cont [15/16] %v274, 128
        %291 = vxpose.xlu0.b32.end [16/16] %v275, 128
        %v292 = vpop.trf.xlu0
        %v293 = vpop.trf.xlu0
        %v294 = vpop.trf.xlu0
        %v295 = vpop.trf.xlu0
        %v296 = vpop.trf.xlu0
        %v297 = vpop.trf.xlu0
        %v298 = vpop.trf.xlu0
        %v299 = vpop.trf.xlu0
        %v300 = vpop.trf.xlu0
        %v301 = vpop.trf.xlu0
        %v302 = vpop.trf.xlu0
        %v303 = vpop.trf.xlu0
        %v304 = vpop.trf.xlu0
        %v305 = vpop.trf.xlu0
        %v306 = vpop.trf.xlu0
        %v307 = vpop.trf.xlu0
        %v308 = vmul.f32 %v244, %v292
        %v309 = vmul.f32 %v245, %v293
        %v310 = vmul.f32 %v246, %v294
        %v311 = vmul.f32 %v247, %v295
        %v312 = vmul.f32 %v248, %v296
        %v313 = vmul.f32 %v249, %v297
        %v314 = vmul.f32 %v250, %v298
        %v315 = vmul.f32 %v251, %v299
        %v316 = vmul.f32 %v252, %v300
        %v317 = vmul.f32 %v253, %v301
        %v318 = vmul.f32 %v254, %v302
        %v319 = vmul.f32 %v255, %v303
        %v320 = vmul.f32 %v256, %v304
        %v321 = vmul.f32 %v257, %v305
        %v322 = vmul.f32 %v258, %v306
        %v323 = vmul.f32 %v259, %v307
        %v324 = vadd.f32 %v308, %v244
        %v325 = vadd.f32 %v309, %v245
        %v326 = vadd.f32 %v310, %v246
        %v327 = vadd.f32 %v311, %v247
        %v328 = vadd.f32 %v312, %v248
        %v329 = vadd.f32 %v313, %v249
        %v330 = vadd.f32 %v314, %v250
        %v331 = vadd.f32 %v315, %v251
        %v332 = vadd.f32 %v316, %v252
        %v333 = vadd.f32 %v317, %v253
        %v334 = vadd.f32 %v318, %v254
        %v335 = vadd.f32 %v319, %v255
        %v336 = vadd.f32 %v320, %v256
        %v337 = vadd.f32 %v321, %v257
        %v338 = vadd.f32 %v322, %v258
        %v339 = vadd.f32 %v323, %v259
        %v340 = vxor.u32 %v324, 2147483648
        %v341 = vxor.u32 %v325, 2147483648
        %v342 = vxor.u32 %v326, 2147483648
        %v343 = vxor.u32 %v327, 2147483648
        %v344 = vxor.u32 %v328, 2147483648
        %v345 = vxor.u32 %v329, 2147483648
        %v346 = vxor.u32 %v330, 2147483648
        %v347 = vxor.u32 %v331, 2147483648
        %v348 = vxor.u32 %v332, 2147483648
        %v349 = vxor.u32 %v333, 2147483648
        %v350 = vxor.u32 %v334, 2147483648
        %v351 = vxor.u32 %v335, 2147483648
        %v352 = vxor.u32 %v336, 2147483648
        %v353 = vxor.u32 %v337, 2147483648
        %v354 = vxor.u32 %v338, 2147483648
        %v355 = vxor.u32 %v339, 2147483648
        %v356 = vmul.f32 %v340, 1.442695
        %v357 = vpow.pop %v356
        %v358 = vmul.f32 %v341, 1.442695
        %v359 = vpow.pop %v358
        %v360 = vmul.f32 %v342, 1.442695
        %v361 = vpow.pop %v360
        %v362 = vmul.f32 %v343, 1.442695
        %v363 = vpow.pop %v362
        %v364 = vmul.f32 %v344, 1.442695
        %v365 = vpow.pop %v364
        %v366 = vmul.f32 %v345, 1.442695
        %v367 = vpow.pop %v366
        %v368 = vmul.f32 %v346, 1.442695
        %v369 = vpow.pop %v368
        %v370 = vmul.f32 %v347, 1.442695
        %v371 = vpow.pop %v370
        %v372 = vmul.f32 %v348, 1.442695
        %v373 = vpow.pop %v372
        %v374 = vmul.f32 %v349, 1.442695
        %v375 = vpow.pop %v374
        %v376 = vmul.f32 %v350, 1.442695
        %v377 = vpow.pop %v376
        %v378 = vmul.f32 %v351, 1.442695
        %v379 = vpow.pop %v378
        %v380 = vmul.f32 %v352, 1.442695
        %v381 = vpow.pop %v380
        %v382 = vmul.f32 %v353, 1.442695
        %v383 = vpow.pop %v382
        %v384 = vmul.f32 %v354, 1.442695
        %v385 = vpow.pop %v384
        %v386 = vmul.f32 %v355, 1.442695
        %v387 = vpow.pop %v386
        %v388 = vadd.f32 %v357, 1.0
        %v389 = vadd.f32 %v359, 1.0
        %v390 = vadd.f32 %v361, 1.0
        %v391 = vadd.f32 %v363, 1.0
        %v392 = vadd.f32 %v365, 1.0
        %v393 = vadd.f32 %v367, 1.0
        %v394 = vadd.f32 %v369, 1.0
        %v395 = vadd.f32 %v371, 1.0
        %v396 = vadd.f32 %v373, 1.0
        %v397 = vadd.f32 %v375, 1.0
        %v398 = vadd.f32 %v377, 1.0
        %v399 = vadd.f32 %v379, 1.0
        %v400 = vadd.f32 %v381, 1.0
        %v401 = vadd.f32 %v383, 1.0
        %v402 = vadd.f32 %v385, 1.0
        %v403 = vadd.f32 %v387, 1.0
        %v404 = vrcp.pop %v388
        %v405 = vmul.f32 1.0, %v404
        %v406 = vrcp.pop %v389
        %v407 = vmul.f32 1.0, %v406
        %v408 = vrcp.pop %v390
        %v409 = vmul.f32 1.0, %v408
        %v410 = vrcp.pop %v391
        %v411 = vmul.f32 1.0, %v410
        %v412 = vrcp.pop %v392
        %v413 = vmul.f32 1.0, %v412
        %v414 = vrcp.pop %v393
        %v415 = vmul.f32 1.0, %v414
        %v416 = vrcp.pop %v394
        %v417 = vmul.f32 1.0, %v416
        %v418 = vrcp.pop %v395
        %v419 = vmul.f32 1.0, %v418
        %v420 = vrcp.pop %v396
        %v421 = vmul.f32 1.0, %v420
        %v422 = vrcp.pop %v397
        %v423 = vmul.f32 1.0, %v422
        %v424 = vrcp.pop %v398
        %v425 = vmul.f32 1.0, %v424
        %v426 = vrcp.pop %v399
        %v427 = vmul.f32 1.0, %v426
        %v428 = vrcp.pop %v400
        %v429 = vmul.f32 1.0, %v428
        %v430 = vrcp.pop %v401
        %v431 = vmul.f32 1.0, %v430
        %v432 = vrcp.pop %v402
        %v433 = vmul.f32 1.0, %v432
        %v434 = vrcp.pop %v403
        %v435 = vmul.f32 1.0, %v434
        %v436 = vadd.f32 %v405, %v244
        %v437 = vadd.f32 %v407, %v245
        %v438 = vadd.f32 %v409, %v246
        %v439 = vadd.f32 %v411, %v247
        %v440 = vadd.f32 %v413, %v248
        %v441 = vadd.f32 %v415, %v249
        %v442 = vadd.f32 %v417, %v250
        %v443 = vadd.f32 %v419, %v251
        %v444 = vadd.f32 %v421, %v252
        %v445 = vadd.f32 %v423, %v253
        %v446 = vadd.f32 %v425, %v254
        %v447 = vadd.f32 %v427, %v255
        %v448 = vadd.f32 %v429, %v256
        %v449 = vadd.f32 %v431, %v257
        %v450 = vadd.f32 %v433, %v258
        %v451 = vadd.f32 %v435, %v259
        %v452 = vmax.f32 %v436, 0.0
        %v453 = vmax.f32 %v437, 0.0
        %v454 = vmax.f32 %v438, 0.0
        %v455 = vmax.f32 %v439, 0.0
        %v456 = vmax.f32 %v440, 0.0
        %v457 = vmax.f32 %v441, 0.0
        %v458 = vmax.f32 %v442, 0.0
        %v459 = vmax.f32 %v443, 0.0
        %v460 = vmax.f32 %v444, 0.0
        %v461 = vmax.f32 %v445, 0.0
        %v462 = vmax.f32 %v446, 0.0
        %v463 = vmax.f32 %v447, 0.0
        %v464 = vmax.f32 %v448, 0.0
        %v465 = vmax.f32 %v449, 0.0
        %v466 = vmax.f32 %v450, 0.0
        %v467 = vmax.f32 %v451, 0.0
        %468 = vst [vmem:[%s240] sm:$0xff] %v452
        %469 = vst [vmem:[%s240 + $0x8] sm:$0xff] %v453
        %470 = vst [vmem:[%s240 + $0x10] sm:$0xff] %v454
        %471 = vst [vmem:[%s240 + $0x18] sm:$0xff] %v455
        %472 = vst [vmem:[%s240 + $0x20] sm:$0xff] %v456
        %473 = vst [vmem:[%s240 + $0x28] sm:$0xff] %v457
        %474 = vst [vmem:[%s240 + $0x30] sm:$0xff] %v458
        %475 = vst [vmem:[%s240 + $0x38] sm:$0xff] %v459
        %476 = vst [vmem:[%s240 + $0x40] sm:$0xff] %v460
        %477 = vst [vmem:[%s240 + $0x48] sm:$0xff] %v461
        %478 = vst [vmem:[%s240 + $0x50] sm:$0xff] %v462
        %479 = vst [vmem:[%s240 + $0x58] sm:$0xff] %v463
        %480 = vst [vmem:[%s240 + $0x60] sm:$0xff] %v464
        %481 = vst [vmem:[%s240 + $0x68] sm:$0xff] %v465
        %482 = vst [vmem:[%s240 + $0x70] sm:$0xff] %v466
        %483 = vst [vmem:[%s240 + $0x78] sm:$0xff] %v467
        %s484 = sand.u32 %s113, 1
        %s485 = scalar_lea.sflag [#allocation4], %s484
        %s486 = sand.u32 %s113, 1
        %s487 = smul.addr %s486, 128
        %s488 = scalar_lea.vmem [#allocation7], %s487
        // Predicated region
        $region37: #{fused_permute_mul_sigmoid_relu.1} parent=27 // pred_check
          %p489 = pneg %p123
        $region38: #{fused_permute_mul_sigmoid_relu.1} parent=27 // pred_check_branch
          %491 = sbr.rel (%p489) target = $region40
        $region39: #{fused_permute_mul_sigmoid_relu.1} parent=27 // pred_region
          %s492 = smul.u32 16, %s27
          %s494 = ssub.s32 2048, 2048
          %495 = vsyncadd %s485, %s494
          %s496 = smul.addr %s492, 3
          %s497 = sadd.s32 %s28, %s496
          %s498 = smul.addr %s29, 96
          %s499 = sadd.s32 %s497, %s498
          %s500 = smul.addr %s499, 128
          %s501 = scalar_lea.hbm %s2, %s500
          %s502 = sshll.u32 %s488, 4
          %s503 = int_to_ptr.vmem [resolvable:$true] %s502
          %508 = dma.vmem_to_hbm [thread:$0]  %s503, 2048, %s501, %s485, 128, 384, 8
        $region40: #{fused_permute_mul_sigmoid_relu.1} parent=27 // pred_fallthru
          _
      $region28: #{fused_permute_mul_sigmoid_relu.1} parent=5 // pred_fallthru
        _
      %p509 = scmp.le.s32.totalorder 2, %s17
      // Predicated region
      $region41: #{fused_permute_mul_sigmoid_relu.1} parent=5 // pred_check
        %p510 = pneg %p509
      $region42: #{fused_permute_mul_sigmoid_relu.1} parent=5 // pred_check_branch
        %512 = sbr.rel (%p510) target = $region44
      $region43: #{fused_permute_mul_sigmoid_relu.1} parent=5 // pred_region
        %s513 = ssub.s32 %s17, 2
        // Predicated region
        $region45: #{fused_permute_mul_sigmoid_relu.1} parent=43 // pred_check
          %p514 = pneg %p129
        $region46: #{fused_permute_mul_sigmoid_relu.1} parent=43 // pred_check_branch
          %516 = sbr.rel (%p514) target = $region48
        $region47: #{fused_permute_mul_sigmoid_relu.1} parent=43 // pred_region
          %s517 = sand.u32 %s114, 1
          %s518 = scalar_lea.sflag [#allocation4], %s517
          %s519 = sand.u32 %s114, 1
          %s520 = smul.addr %s519, 128
          %s521 = scalar_lea.vmem [#allocation7], %s520
          %522 = dma.done %s518, 2048
        $region48: #{fused_permute_mul_sigmoid_relu.1} parent=43 // pred_fallthru
          _
      $region44: #{fused_permute_mul_sigmoid_relu.1} parent=5 // pred_fallthru
        _
    $region6: #{fused_permute_mul_sigmoid_relu.1} parent=1 // loop_footer
      %s21 = sadd.s32 1, %s17
    $region7: #{fused_permute_mul_sigmoid_relu.1} parent=1 // loop_footer_branch
      %16 = sbr.rel target = $region3
    $region8: #{fused_permute_mul_sigmoid_relu.1} parent=1 // loop_exit
      _
    %523 = vsyncpa [#allocation3], 1
    %s524 = scalar_lea.sflag [#allocation3], 1
    %525 = vsyncpa %s524, 1
    %526 = vsyncpa [#allocation6], 1
    %s527 = scalar_lea.sflag [#allocation6], 1
    %528 = vsyncpa %s527, 1
    %529 = vsyncpa [#allocation4], 1
    %s530 = scalar_lea.sflag [#allocation4], 1
    %531 = vsyncpa %s530, 1

</llo_original>
